<compile_context>
chip_gen: v6e
topology: v6e:2x2x1
jax: 0.10.0
libtpu: 0.0.40
codegen_flags: <defaults>
</compile_context>

<pallas_src>
import functools

import jax
import jax.numpy as jnp
from jax import lax
from jax.experimental import pallas as pl
from jax.experimental.pallas import tpu as pltpu


def _round_up(v, m):
    return pl.cdiv(v, m) * m


def _ccbn1d_kernel(x_ref, y_ref, w_ref, b_ref, o_ref, *, eps, tc):
    # x_ref: (B, TC), y_ref: (B, IN), w_ref: (IN, 2*TC), b_ref: (1, 2*TC)
    x = x_ref[...]
    y = y_ref[...]

    # Fused conditional gain/bias: one MXU pass, f32 accumulate.
    # First TC lanes -> gain (its bias already includes the +1), last TC -> bias.
    gb = jnp.dot(y, w_ref[...], preferred_element_type=jnp.float32) \
         + b_ref[...].astype(jnp.float32)                       # (B, 2*TC)
    gain = gb[:, :tc]
    bias = gb[:, tc:]

    # Batch norm (training mode): per-channel stats over the batch dim,
    # biased variance.  Subtract-then-square form for numerical stability.
    xf = x.astype(jnp.float32)
    mean = jnp.mean(xf, axis=0, keepdims=True)                  # (1, TC)
    centered = xf - mean
    var = jnp.mean(centered * centered, axis=0, keepdims=True)  # (1, TC), >= 0
    out = centered * lax.rsqrt(var + eps)                       # EUP rsqrt

    o_ref[...] = (out * gain + bias).astype(o_ref.dtype)


def ccbn_1d_forward(x, y, w_gain, b_gain, w_bias, b_bias, *, eps=1e-5,
                    tile_c=None):
    """x: (B, C), y: (B, In), w_*: (In, C) [pre-transposed], b_*: (C,)."""
    B, C = x.shape
    IN = y.shape[1]

    # Channel tile: multiple of 128 (lane-dense), capped for VMEM headroom.
    if tile_c is None:
        tile_c = min(512, _round_up(C, 128))
    TC = int(tile_c)
    Cp = _round_up(C, TC)
    n_tiles = Cp // TC
    pad_c = Cp - C

    # Pad channel dim; padded channels produce finite values (var=0 ->
    # rsqrt(eps) finite, gain=1, bias=0) that are sliced off after the call.
    x_p = jnp.pad(x, ((0, 0), (0, pad_c))) if pad_c else x

    # Interleave gain/bias weights at tile granularity -> (IN, n_tiles*2*TC):
    # block i is [w_gain tile i | w_bias tile i], so one dot per grid step.
    wg = jnp.pad(w_gain, ((0, 0), (0, pad_c))) if pad_c else w_gain
    wb = jnp.pad(w_bias, ((0, 0), (0, pad_c))) if pad_c else w_bias
    w_cat = jnp.stack(
        [wg.reshape(IN, n_tiles, TC), wb.reshape(IN, n_tiles, TC)], axis=2
    ).reshape(IN, n_tiles * 2 * TC)

    # Fold the "+1" into the gain bias; same tile-interleaved layout.
    bg = jnp.pad(b_gain + 1.0, (0, pad_c)) if pad_c else (b_gain + 1.0)
    bb = jnp.pad(b_bias, (0, pad_c)) if pad_c else b_bias
    b_cat = jnp.stack(
        [bg.reshape(1, n_tiles, TC), bb.reshape(1, n_tiles, TC)], axis=2
    ).reshape(1, n_tiles * 2 * TC)

    kernel = functools.partial(_ccbn1d_kernel, eps=eps, tc=TC)
    out_p = pl.pallas_call(
        kernel,
        out_shape=jax.ShapeDtypeStruct((B, Cp), x.dtype),
        grid=(n_tiles,),
        in_specs=[
            pl.BlockSpec((B, TC), lambda i: (0, i)),        # x tile
            pl.BlockSpec((B, IN), lambda i: (0, 0)),        # y (VMEM-resident)
            pl.BlockSpec((IN, 2 * TC), lambda i: (0, i)),   # fused weights
            pl.BlockSpec((1, 2 * TC), lambda i: (0, i)),    # fused biases
        ],
        out_specs=pl.BlockSpec((B, TC), lambda i: (0, i)),
        compiler_params=pltpu.CompilerParams(
            dimension_semantics=("parallel",),
            vmem_limit_bytes=48 * 1024 * 1024,
        ),
    )(x_p, y, w_cat, b_cat)

    return out_p[:, :C] if pad_c else out_p


def _reference(x, y, w_gain, b_gain, w_bias, b_bias, eps=1e-5):
    gain = 1.0 + y @ w_gain + b_gain
    bias = y @ w_bias + b_bias
    xf = x.astype(jnp.float32)
    mean = jnp.mean(xf, axis=0, keepdims=True)
    centered = xf - mean
    var = jnp.mean(centered * centered, axis=0, keepdims=True)
    out = centered * lax.rsqrt(var + eps)
    return (out * gain + bias).astype(x.dtype)


def _run_case(B, C, IN, key):
    kx, ky, kwg, kbg, kwb, kbb = jax.random.split(key, 6)
    x = jax.random.normal(kx, (B, C), dtype=jnp.float32)
    y = jax.random.normal(ky, (B, IN), dtype=jnp.float32)

    bound = 1.0 / float(IN) ** 0.5
    w_gain = jax.random.uniform(kwg, (IN, C), minval=-bound, maxval=bound)
    b_gain = jax.random.uniform(kbg, (C,), minval=-bound, maxval=bound)
    w_bias = jax.random.uniform(kwb, (IN, C), minval=-bound, maxval=bound)
    b_bias = jax.random.uniform(kbb, (C,), minval=-bound, maxval=bound)

    out = ccbn_1d_forward(x, y, w_gain, b_gain, w_bias, b_bias)
    out = jax.block_until_ready(out)

    ref = _reference(x, y, w_gain, b_gain, w_bias, b_bias)
    assert out.shape == (B, C)
    # MXU vs XLA-default matmul precision can differ slightly; keep a tolerance
    # loose enough to absorb that while still catching real bugs.
    assert jnp.allclose(out, ref, atol=1e-2, rtol=1e-2), \
        float(jnp.max(jnp.abs(out - ref)))


if __name__ == "__main__":
    key = jax.random.PRNGKey(0)
    k1, k2 = jax.random.split(key)
    # Small shapes consistent with ccbn_1d: x (B, output_size), y (B, input_size).
    _run_case(8, 32, 16, k1)              # C < 128 -> padded to one lane-dense tile
    _run_case(16, 512, 32, k2)            # exercises the multi-tile "parallel" grid
    print("KERNEL_OK")
</pallas_src>

<mosaic_0001>
module attributes {stable_mosaic.version = 11 : i64} {
  func.func @_ccbn1d_kernel(%arg0: i32, %arg1: memref<8x128xf32, #tpu.memory_space<vmem>>, %arg2: memref<8x16xf32, #tpu.memory_space<vmem>>, %arg3: memref<16x256xf32, #tpu.memory_space<vmem>>, %arg4: memref<1x256xf32, #tpu.memory_space<vmem>>, %arg5: memref<8x128xf32, #tpu.memory_space<vmem>>) attributes {dimension_semantics = [#tpu.dimension_semantics<parallel>], iteration_bounds = array<i64: 1>, scalar_prefetch = 0 : i64, scratch_operands = 0 : i64, tpu.core_type = #tpu.core_type<tc>, window_params = [{transform_indices = @transform_0, window_bounds = array<i64: 8, 128>}, {pipeline_mode = #tpu.pipeline_mode<synchronous>, transform_indices = @transform_1, window_bounds = array<i64: 8, 16>}, {transform_indices = @transform_2, window_bounds = array<i64: 16, 256>}, {transform_indices = @transform_3, window_bounds = array<i64: 1, 256>}, {transform_indices = @transform_4, window_bounds = array<i64: 8, 128>}]} {
    %c0 = arith.constant 0 : index
    %c0_0 = arith.constant 0 : index
    %0 = vector.load %arg1[%c0, %c0_0] : memref<8x128xf32, #tpu.memory_space<vmem>>, vector<8x128xf32>
    %c0_1 = arith.constant 0 : index
    %c0_2 = arith.constant 0 : index
    %1 = vector.load %arg2[%c0_1, %c0_2] : memref<8x16xf32, #tpu.memory_space<vmem>>, vector<8x16xf32>
    %c0_3 = arith.constant 0 : index
    %c0_4 = arith.constant 0 : index
    %2 = vector.load %arg3[%c0_3, %c0_4] : memref<16x256xf32, #tpu.memory_space<vmem>>, vector<16x256xf32>
    %cst = arith.constant dense<0.000000e+00> : vector<8x256xf32>
    %3 = tpu.matmul %1, %2, %cst {dimension_numbers = #tpu.dot_dimension_numbers<[1], [0], [0], [1], [0, 0, 1, 1], [], []>} : vector<8x16xf32>, vector<16x256xf32>, vector<8x256xf32> -> vector<8x256xf32>
    %c0_5 = arith.constant 0 : index
    %c0_6 = arith.constant 0 : index
    %4 = vector.load %arg4[%c0_5, %c0_6] : memref<1x256xf32, #tpu.memory_space<vmem>>, vector<1x256xf32>
    %5 = vector.broadcast %4 : vector<1x256xf32> to vector<8x256xf32>
    %6 = arith.addf %3, %5 : vector<8x256xf32>
    %7 = vector.extract_strided_slice %6 {offsets = [0, 0], sizes = [8, 128], strides = [1, 1]} : vector<8x256xf32> to vector<8x128xf32>
    %8 = vector.extract_strided_slice %6 {offsets = [0, 128], sizes = [8, 128], strides = [1, 1]} : vector<8x256xf32> to vector<8x128xf32>
    %cst_7 = arith.constant dense<0.000000e+00> : vector<128xf32>
    %9 = vector.multi_reduction <add>, %0, %cst_7 [0] : vector<8x128xf32> to vector<128xf32>
    %10 = vector.shape_cast %9 : vector<128xf32> to vector<1x128xf32>
    %cst_8 = arith.constant 8.000000e+00 : f32
    %11 = vector.broadcast %cst_8 : f32 to vector<1x128xf32>
    %12 = arith.divf %10, %11 : vector<1x128xf32>
    %13 = vector.broadcast %12 : vector<1x128xf32> to vector<8x128xf32>
    %14 = arith.subf %0, %13 : vector<8x128xf32>
    %15 = arith.mulf %14, %14 : vector<8x128xf32>
    %cst_9 = arith.constant dense<0.000000e+00> : vector<128xf32>
    %16 = vector.multi_reduction <add>, %15, %cst_9 [0] : vector<8x128xf32> to vector<128xf32>
    %17 = vector.shape_cast %16 : vector<128xf32> to vector<1x128xf32>
    %cst_10 = arith.constant 8.000000e+00 : f32
    %18 = vector.broadcast %cst_10 : f32 to vector<1x128xf32>
    %19 = arith.divf %17, %18 : vector<1x128xf32>
    %cst_11 = arith.constant 9.99999974E-6 : f32
    %20 = vector.broadcast %cst_11 : f32 to vector<1x128xf32>
    %21 = arith.addf %19, %20 : vector<1x128xf32>
    %22 = math.rsqrt %21 : vector<1x128xf32>
    %23 = vector.broadcast %22 : vector<1x128xf32> to vector<8x128xf32>
    %24 = arith.mulf %14, %23 : vector<8x128xf32>
    %25 = arith.mulf %24, %7 : vector<8x128xf32>
    %26 = arith.addf %25, %8 : vector<8x128xf32>
    %c0_12 = arith.constant 0 : index
    %c0_13 = arith.constant 0 : index
    %27 = vector.load %arg5[%c0_12, %c0_13] : memref<8x128xf32, #tpu.memory_space<vmem>>, vector<8x128xf32>
    tpu.vector_store %arg5[%c0_12, %c0_13], %26 {strides = array<i32>} : memref<8x128xf32, #tpu.memory_space<vmem>>, vector<8x128xf32>,
    return
  }
  func.func @transform_0(%arg0: i32) -> (i32, i32) {
    %c0_i32 = arith.constant 0 : i32
    %c0_i32_0 = arith.constant 0 : i32
    return %c0_i32, %arg0 : i32, i32
  }
  func.func @transform_1(%arg0: i32) -> (i32, i32) {
    %c0_i32 = arith.constant 0 : i32
    %c0_i32_0 = arith.constant 0 : i32
    %c0_i32_1 = arith.constant 0 : i32
    return %c0_i32, %c0_i32_0 : i32, i32
  }
  func.func @transform_2(%arg0: i32) -> (i32, i32) {
    %c0_i32 = arith.constant 0 : i32
    %c0_i32_0 = arith.constant 0 : i32
    return %c0_i32, %arg0 : i32, i32
  }
  func.func @transform_3(%arg0: i32) -> (i32, i32) {
    %c0_i32 = arith.constant 0 : i32
    %c0_i32_0 = arith.constant 0 : i32
    return %c0_i32, %arg0 : i32, i32
  }
  func.func @transform_4(%arg0: i32) -> (i32, i32) {
    %c0_i32 = arith.constant 0 : i32
    %c0_i32_0 = arith.constant 0 : i32
    return %c0_i32, %arg0 : i32, i32
  }
}

</mosaic_0001>

<llo_original>
// kernel: tpu_custom_call.1
$region0: #{tpu_custom_call.1}
  #allocation0 [shape = 'u32[]', space=smem, size = 0x4, offset = 0x4, fixed_abs, tag = 'smem constant byte address 0x4 - core index']
  #allocation1 [shape = 'u32[144,128]{1,0:T(1,128)}', space=vmem, size = 0x12000, scoped, tag = 'internal scratch']
  %s0 = inlined_call_operand.hbm [shape: f32[8,128], index: 0, kind: input, shape index: {}]
  %s1 = inlined_call_operand.hbm [shape: f32[8,16], index: 1, kind: input, shape index: {}]
  %s2 = inlined_call_operand.hbm [shape: f32[16,256], index: 2, kind: input, shape index: {}]
  %s3 = inlined_call_operand.vmem [shape: f32[1,256], index: 3, kind: input, shape index: {}]
  %s4 = inlined_call_operand.hbm [shape: f32[8,128], index: 4, kind: output, shape index: {}]
  %s5 = sld [smem:[#allocation0]]
  $region38: #{tpu_custom_call.1} parent=0
    _
  %s7 = ssub.s32 1, %s5
  %s8 = scalar_select 0, %s7, %s5
  $region1: #{tpu_custom_call.1} parent=0
    #allocation2 [shape = 'u8[4096]{0}', space=vmem, size = 0x1000, scoped, tag = 'input window, operand 0, single buffered']
    #allocation3 [shape = 's32[1]{0}', space=sflag, size = 0x4, scoped, tag = 'scoped memory for tpu_custom_call.1']
    #allocation4 [shape = 's32[1]{0}', space=sflag, size = 0x4, scoped, tag = 'scoped memory for tpu_custom_call.1']
    #allocation5 [shape = 'u8[4096]{0}', space=vmem, size = 0x1000, scoped, tag = 'input window, operand 1, single buffered']
    #allocation6 [shape = 's32[1]{0}', space=sflag, size = 0x4, scoped, tag = 'scoped memory for tpu_custom_call.1']
    #allocation7 [shape = 'u8[16384]{0}', space=vmem, size = 0x4000, scoped, tag = 'input window, operand 2, single buffered']
    #allocation8 [shape = 'u8[4096]{0}', space=vmem, size = 0x1000, scoped, tag = 'output window, operand 0, single buffered']
    %9 = vsyncpa [#allocation3], 0
    %10 = vsyncpa [#allocation6], 0
    %11 = vsyncpa [#allocation4], 0
    // Predicated region
    $region2: #{tpu_custom_call.1} parent=1 // pred_check
      _
    $region3: #{tpu_custom_call.1} parent=1 // pred_check_branch
      %13 = sbr.rel (0) target = $region5
    $region4: #{tpu_custom_call.1} parent=1 // pred_region
      %s15 = ssub.s32 128, 128
      %16 = vsyncadd [#allocation3], %s15
      %s18 = sshll.u32 [#allocation2], 4
      %s19 = int_to_ptr.vmem [resolvable:$true] %s18
      %21 = dma.hbm_to_vmem [thread:$0]  %s0, 128, %s19, [#allocation3]
    $region5: #{tpu_custom_call.1} parent=1 // pred_fallthru
      _
    // Predicated region
    $region6: #{tpu_custom_call.1} parent=1 // pred_check
      _
    $region7: #{tpu_custom_call.1} parent=1 // pred_check_branch
      %23 = sbr.rel (0) target = $region9
    $region8: #{tpu_custom_call.1} parent=1 // pred_region
      %s25 = ssub.s32 128, 128
      %26 = vsyncadd [#allocation6], %s25
      %s28 = sshll.u32 [#allocation5], 4
      %s29 = int_to_ptr.vmem [resolvable:$true] %s28
      %31 = dma.hbm_to_vmem [thread:$0]  %s1, 128, %s29, [#allocation6]
    $region9: #{tpu_custom_call.1} parent=1 // pred_fallthru
      _
    // Predicated region
    $region10: #{tpu_custom_call.1} parent=1 // pred_check
      _
    $region11: #{tpu_custom_call.1} parent=1 // pred_check_branch
      %33 = sbr.rel (0) target = $region13
    $region12: #{tpu_custom_call.1} parent=1 // pred_region
      %s35 = ssub.s32 512, 512
      %36 = vsyncadd [#allocation6], %s35
      %s37 = sshll.u32 [#allocation7], 4
      %s38 = int_to_ptr.vmem [resolvable:$true] %s37
      %43 = dma.hbm_to_vmem [thread:$0]  %s2, 512, %s38, [#allocation6], 256, 256, 16
    $region13: #{tpu_custom_call.1} parent=1 // pred_fallthru
      _
    // Predicated region
    $region14: #{tpu_custom_call.1} parent=1 // pred_check
      _
    $region15: #{tpu_custom_call.1} parent=1 // pred_check_branch
      %45 = sbr.rel (0) target = $region17
    $region16: #{tpu_custom_call.1} parent=1 // pred_region
      _
    $region17: #{tpu_custom_call.1} parent=1 // pred_fallthru
      _
    // Predicated region
    $region18: #{tpu_custom_call.1} parent=1 // pred_check
      _
    $region19: #{tpu_custom_call.1} parent=1 // pred_check_branch
      %47 = sbr.rel (0) target = $region21
    $region20: #{tpu_custom_call.1} parent=1 // pred_region
      %48 = dma.done [#allocation3], 128
    $region21: #{tpu_custom_call.1} parent=1 // pred_fallthru
      _
    // Predicated region
    $region22: #{tpu_custom_call.1} parent=1 // pred_check
      _
    $region23: #{tpu_custom_call.1} parent=1 // pred_check_branch
      %50 = sbr.rel (0) target = $region25
    $region24: #{tpu_custom_call.1} parent=1 // pred_region
      %51 = dma.done [#allocation6], 128
    $region25: #{tpu_custom_call.1} parent=1 // pred_fallthru
      _
    // Predicated region
    $region26: #{tpu_custom_call.1} parent=1 // pred_check
      _
    $region27: #{tpu_custom_call.1} parent=1 // pred_check_branch
      %53 = sbr.rel (0) target = $region29
    $region28: #{tpu_custom_call.1} parent=1 // pred_region
      %54 = dma.done [#allocation6], 512
    $region29: #{tpu_custom_call.1} parent=1 // pred_fallthru
      _
    %v55 = vld [vmem:[#allocation2] sm:$0xff]
    %v56 = vld [vmem:[#allocation5] sm:$0xff]
    %v57 = vld [vmem:[#allocation7] sm:$0xff]
    %v58 = vld [vmem:[#allocation7 + $0x8] sm:$0xff]
    %v59 = vld [vmem:[#allocation7 + $0x10] sm:$0xff]
    %v60 = vld [vmem:[#allocation7 + $0x18] sm:$0xff]
    %v61 = vld [vmem:[%s3] sm:$0x3]
    %v63 = vlaneseq
    %v64 = vshrl.u32 %v63, 7
    %v65 = vsub.s32 0, %v64
    %v66 = vrot.slane %v61, %v65
    %v67 = vlaneseq
    %v68 = vshrl.u32 %v67, 7
    %v69 = vsub.s32 1, %v68
    %v70 = vrot.slane %v61, %v69
    %vm73 = vcmask 130048
    %v75 = vsel %vm73, %v56, 0
    %77 = vmatprep.subr.mxu0 0.0
    %78 = vmatpush1.msra.mxu0 0.0
    %79 = vmatprep.subr.mxu0 0.0
    %80 = vmatpush1.msra.mxu0 0.0
    %81 = vmatprep.subr.mxu0 0.0
    %82 = vmatpush1.msra.mxu0 0.0
    %83 = vmatprep.subr.mxu0 0.0
    %84 = vmatpush1.msra.mxu0 0.0
    %85 = vmatprep.subr.mxu0 0.0
    %86 = vmatpush1.msra.mxu0 0.0
    %87 = vmatprep.subr.mxu0 0.0
    %88 = vmatpush1.msra.mxu0 0.0
    %89 = vmatprep.subr.mxu0 0.0
    %90 = vmatpush1.msra.mxu0 0.0
    %91 = vmatprep.subr.mxu0 0.0
    %92 = vmatpush1.msra.mxu0 0.0
    %93 = vmatprep.subr.mxu0 0.0
    %94 = vmatpush1.msra.mxu0 0.0
    %95 = vmatprep.subr.mxu0 0.0
    %96 = vmatpush1.msra.mxu0 0.0
    %97 = vmatprep.subr.mxu0 0.0
    %98 = vmatpush1.msra.mxu0 0.0
    %99 = vmatprep.subr.mxu0 0.0
    %100 = vmatpush1.msra.mxu0 0.0
    %101 = vmatprep.subr.mxu0 0.0
    %102 = vmatpush1.msra.mxu0 0.0
    %103 = vmatprep.subr.mxu0 0.0
    %104 = vmatpush1.msra.mxu0 0.0
    %105 = vmatprep.subr.mxu0 %v60
    %106 = vmatpush1.msra.mxu0 %v59
    %107 = vmatprep.subr.mxu0 %v58
    %108 = vmatpush1.msra.mxu0 %v57
    %109 = vmatprep.subr.mxu0 0.0
    %110 = vmatpush2.msra.mxu0 0.0
    %111 = vmatprep.subr.mxu0 0.0
    %112 = vmatpush2.msra.mxu0 0.0
    %113 = vmatprep.subr.mxu0 0.0
    %114 = vmatpush2.msra.mxu0 0.0
    %115 = vmatprep.subr.mxu0 0.0
    %116 = vmatpush2.msra.mxu0 0.0
    %117 = vmatprep.subr.mxu0 0.0
    %118 = vmatpush2.msra.mxu0 0.0
    %119 = vmatprep.subr.mxu0 0.0
    %120 = vmatpush2.msra.mxu0 0.0
    %121 = vmatprep.subr.mxu0 0.0
    %122 = vmatpush2.msra.mxu0 0.0
    %123 = vmatprep.subr.mxu0 0.0
    %124 = vmatpush2.msra.mxu0 0.0
    %125 = vmatprep.subr.mxu0 0.0
    %126 = vmatpush2.msra.mxu0 0.0
    %127 = vmatprep.subr.mxu0 0.0
    %128 = vmatpush2.msra.mxu0 0.0
    %129 = vmatprep.subr.mxu0 0.0
    %130 = vmatpush2.msra.mxu0 0.0
    %131 = vmatprep.subr.mxu0 0.0
    %132 = vmatpush2.msra.mxu0 0.0
    %133 = vmatprep.subr.mxu0 0.0
    %134 = vmatpush2.msra.mxu0 0.0
    %135 = vmatprep.subr.mxu0 0.0
    %136 = vmatpush2.msra.mxu0 0.0
    %137 = vmatprep.subr.mxu0 0.0
    %138 = vmatpush2.msra.mxu0 0.0
    %139 = vmatprep.subr.mxu0 0.0
    %140 = vmatpush2.msra.mxu0 0.0
    %141 = vmatprep.mubr.f32.mxu0 0.0
    %142 = vmatmul.mubr.f32.gmra.mxu0 %v75
    %v143 = vpop.f32.mrf.mxu0
    %v144 = vadd.f32 %v66, %v143
    %v145 = vpop.f32.mrf.mxu0
    %v146 = vadd.f32 %v70, %v145
    %147 = vdwg.mxu0
    %v148 = vrot.slane %v55, 4
    %v149 = vadd.f32 %v55, %v148
    %v150 = vrot.slane %v149, 2
    %v151 = vadd.f32 %v149, %v150
    %v152 = vrot.slane %v151, 1
    %v153 = vadd.f32 %v151, %v152
    %v154 = vrcp.pop 8.0
    %v155 = vmul.f32 %v153, %v154
    %v156 = vsub.f32 %v55, %v155
    %v157 = vmul.f32 %v156, %v156
    %v158 = vrot.slane %v157, 4
    %v159 = vadd.f32 %v157, %v158
    %v160 = vrot.slane %v159, 2
    %v161 = vadd.f32 %v159, %v160
    %v162 = vrot.slane %v161, 1
    %v163 = vadd.f32 %v161, %v162
    %v164 = vmul.f32 %v163, %v154
    %v165 = vadd.f32 %v164, 1e-05
    %v166 = vrsqrt.pop %v165
    %v167 = vmul.f32 %v156, %v166
    %v168 = vmul.f32 %v167, %v144
    %v169 = vadd.f32 %v168, %v146
    %170 = vst [vmem:[#allocation8] sm:$0xff] %v169
    // Predicated region
    $region30: #{tpu_custom_call.1} parent=1 // pred_check
      _
    $region31: #{tpu_custom_call.1} parent=1 // pred_check_branch
      %172 = sbr.rel (0) target = $region33
    $region32: #{tpu_custom_call.1} parent=1 // pred_region
      %s174 = ssub.s32 128, 128
      %175 = vsyncadd [#allocation4], %s174
      %s177 = sshll.u32 [#allocation8], 4
      %s178 = int_to_ptr.vmem [resolvable:$true] %s177
      %180 = dma.vmem_to_hbm [thread:$0]  %s178, 128, %s4, [#allocation4]
    $region33: #{tpu_custom_call.1} parent=1 // pred_fallthru
      _
    // Predicated region
    $region34: #{tpu_custom_call.1} parent=1 // pred_check
      _
    $region35: #{tpu_custom_call.1} parent=1 // pred_check_branch
      %182 = sbr.rel (0) target = $region37
    $region36: #{tpu_custom_call.1} parent=1 // pred_region
      %183 = dma.done [#allocation4], 128
    $region37: #{tpu_custom_call.1} parent=1 // pred_fallthru
      _
    %184 = vsyncpa [#allocation3], 1
    %185 = vsyncpa [#allocation6], 1
    %186 = vsyncpa [#allocation4], 1

</llo_original>
